<compile_context>
chip_gen: v7x
topology: tpu7x:2x2x1
jax: 0.10.0
libtpu: 0.0.40
codegen_flags: <defaults>
</compile_context>

<pallas_src>
import jax
import jax.numpy as jnp
from jax.experimental import pallas as pl
from jax.experimental.pallas import tpu as pltpu

_LANES = 128


def _bce_loss(x, y):
    # numerically stable BCE-with-logits:  max(x, 0) - x*y + log1p(exp(-|x|))
    return jnp.maximum(x, 0.0) - x * y + jnp.log1p(jnp.exp(-jnp.abs(x)))


# --------------------------------------------------------------------------- #
# Kernels
# --------------------------------------------------------------------------- #
def _bce_reduce_kernel(yp_ref, yt_ref, out_ref):
    """Unmasked streaming sum.  grid = (shards, steps); out block is resident per shard."""
    @pl.when(pl.program_id(1) == 0)
    def _():
        out_ref[...] = jnp.zeros_like(out_ref)

    x = yp_ref[...].astype(jnp.float32)
    y = yt_ref[...].astype(jnp.float32)
    loss = _bce_loss(x, y)

    # Per-vreg partial sums only (pure VPU adds).  The (tm//8, 8, 128) reshape is
    # (8,128)-tile preserving, so it lowers to a free view; the single cross-lane
    # reduce happens once in the wrapper on the tiny (shards, 8, 128) partials.
    tm = loss.shape[0]
    partial = jnp.sum(loss.reshape(tm // 8, 8, _LANES), axis=0)
    out_ref[...] += partial[None]


def _bce_elementwise_kernel(yp_ref, yt_ref, out_ref):
    x = yp_ref[...].astype(jnp.float32)
    y = yt_ref[...].astype(jnp.float32)
    out_ref[...] = _bce_loss(x, y).astype(out_ref.dtype)


# --------------------------------------------------------------------------- #
# Tiling plans (all sizes are static Python ints)
# --------------------------------------------------------------------------- #
def _plan_reduce(total, tile_rows):
    """Return (tm, steps, shards): equal-size (tm,128) blocks, grid=(shards,steps)."""
    groups = (total // _LANES) // 8          # whole (8,128) element groups
    if groups == 0:
        return 0, 0, 1
    gmax = max(1, tile_rows // 8)            # groups per block (cap)
    blocks_needed = pl.cdiv(groups, gmax)
    shards = 2 if blocks_needed >= 2 else 1  # v7x: second TensorCore via "parallel"
    blocks = shards * pl.cdiv(blocks_needed, shards)
    g_per_block = groups // blocks
    if g_per_block == 0:                     # tiny tile_rows edge case
        shards = 1
        blocks = blocks_needed
        g_per_block = groups // blocks
    return g_per_block * 8, blocks // shards, shards


def _plan_map(total, tile_rows):
    """Return (tm, blocks) for the elementwise path."""
    groups = (total // _LANES) // 8
    if groups == 0:
        return 0, 0
    gmax = max(1, tile_rows // 8)
    blocks = pl.cdiv(groups, gmax)
    return (groups // blocks) * 8, blocks


# --------------------------------------------------------------------------- #
# Wrapper
# --------------------------------------------------------------------------- #
def cross_entropy_loss_chexpert(y_pred, y_true, reduction="mean", *, tile_rows=4096):
    """JAX/Pallas equivalent of CrossEntropyLossChexpert.forward."""
    if y_pred.ndim == 1:
        y_pred = y_pred.reshape(-1, 1)
    if y_true.ndim == 1:
        y_true = y_true.reshape(-1, 1)
    assert y_pred.shape == y_true.shape, "y_pred and y_true must have the same shape"

    n, c = y_pred.shape
    total = n * c
    out_dtype = jnp.promote_types(y_pred.dtype, y_true.dtype)

    flat_p = y_pred.reshape(-1)   # contiguous flatten: free
    flat_t = y_true.reshape(-1)

    if reduction == "none":
        tm, blocks = _plan_map(total, tile_rows)
        bulk = tm * blocks * _LANES
        pieces = []
        if blocks > 0:
            rows = tm * blocks
            bulk_out = pl.pallas_call(
                _bce_elementwise_kernel,
                out_shape=jax.ShapeDtypeStruct((rows, _LANES), out_dtype),
                grid_spec=pltpu.PrefetchScalarGridSpec(
                    num_scalar_prefetch=0,
                    grid=(blocks,),
                    in_specs=[
                        pl.BlockSpec((tm, _LANES), lambda i: (i, 0)),
                        pl.BlockSpec((tm, _LANES), lambda i: (i, 0)),
                    ],
                    out_specs=pl.BlockSpec((tm, _LANES), lambda i: (i, 0)),
                ),
                compiler_params=pltpu.CompilerParams(
                    dimension_semantics=("parallel",),
                ),
            )(flat_p[:bulk].reshape(rows, _LANES),
              flat_t[:bulk].reshape(rows, _LANES))
            pieces.append(bulk_out.reshape(-1))
        if bulk < total:
            # Ragged tail (< one tile): computed in plain JAX.
            xt = flat_p[bulk:].astype(jnp.float32)
            yt = flat_t[bulk:].astype(jnp.float32)
            pieces.append(_bce_loss(xt, yt).astype(out_dtype))
        out_flat = pieces[0] if len(pieces) == 1 else jnp.concatenate(pieces)
        return out_flat.reshape(n, c)

    if reduction not in ("mean", "sum"):
        raise ValueError(f"unsupported reduction: {reduction}")

    tm, steps, shards = _plan_reduce(total, tile_rows)
    bulk = tm * steps * shards * _LANES

    total_sum = jnp.float32(0.0)
    if steps > 0:
        rows = tm * steps * shards
        yp2 = flat_p[:bulk].reshape(rows, _LANES)
        yt2 = flat_t[:bulk].reshape(rows, _LANES)
        partials = pl.pallas_call(
            _bce_reduce_kernel,
            out_shape=jax.ShapeDtypeStruct((shards, 8, _LANES), jnp.float32),
            grid_spec=pltpu.PrefetchScalarGridSpec(
                num_scalar_prefetch=0,
                grid=(shards, steps),
                in_specs=[
                    pl.BlockSpec((tm, _LANES), lambda s, j: (s * steps + j, 0)),
                    pl.BlockSpec((tm, _LANES), lambda s, j: (s * steps + j, 0)),
                ],
                out_specs=pl.BlockSpec((1, 8, _LANES), lambda s, j: (s, 0, 0)),
            ),
            compiler_params=pltpu.CompilerParams(
                dimension_semantics=("parallel", "arbitrary"),
            ),
        )(yp2, yt2)
        total_sum = total_sum + jnp.sum(partials)

    if bulk < total:
        # Ragged tail (< one tile): reduced in plain JAX, added to the bulk sum.
        xt = flat_p[bulk:].astype(jnp.float32)
        yt = flat_t[bulk:].astype(jnp.float32)
        total_sum = total_sum + jnp.sum(_bce_loss(xt, yt))

    if reduction == "mean":
        total_sum = total_sum / jnp.float32(total)
    return total_sum.astype(out_dtype)


# --------------------------------------------------------------------------- #
# Reference + self-test
# --------------------------------------------------------------------------- #
def _reference_bce(y_pred, y_true, reduction="mean"):
    if y_pred.ndim == 1:
        y_pred = y_pred.reshape(-1, 1)
    if y_true.ndim == 1:
        y_true = y_true.reshape(-1, 1)
    x = y_pred.astype(jnp.float32)
    y = y_true.astype(jnp.float32)
    loss = jnp.maximum(x, 0.0) - x * y + jnp.log1p(jnp.exp(-jnp.abs(x)))
    if reduction == "mean":
        return jnp.mean(loss)
    if reduction == "sum":
        return jnp.sum(loss)
    return loss


if __name__ == "__main__":
    key = jax.random.PRNGKey(0)
    k1, k2, k3, k4, k5, k6 = jax.random.split(key, 6)

    # Small CheXpert-style example: 64 samples x 16 binary labels = 1024 elements,
    # exactly one (8,128) tile group -> exercises the Pallas bulk kernel (no tail).
    y_pred = jax.random.normal(k1, (64, 16), dtype=jnp.float32) * 2.0
    y_true = (jax.random.uniform(k2, (64, 16)) > 0.5).astype(jnp.float32)

    loss = jax.block_until_ready(cross_entropy_loss_chexpert(y_pred, y_true, "mean"))
    ref = _reference_bce(y_pred, y_true, "mean")
    assert jnp.allclose(loss, ref, rtol=1e-5, atol=1e-5), (loss, ref)

    loss_s = jax.block_until_ready(cross_entropy_loss_chexpert(y_pred, y_true, "sum"))
    ref_s = _reference_bce(y_pred, y_true, "sum")
    assert jnp.allclose(loss_s, ref_s, rtol=1e-5, atol=1e-3), (loss_s, ref_s)

    loss_n = jax.block_until_ready(cross_entropy_loss_chexpert(y_pred, y_true, "none"))
    ref_n = _reference_bce(y_pred, y_true, "none")
    assert loss_n.shape == (64, 16)
    assert jnp.allclose(loss_n, ref_n, rtol=1e-5, atol=1e-5)

    # Non-tile-aligned shape (250 x 14 = 3500 elems): bulk kernel + ragged JAX tail.
    yp2 = jax.random.normal(k3, (250, 14), dtype=jnp.float32)
    yt2 = (jax.random.uniform(k4, (250, 14)) > 0.5).astype(jnp.float32)
    for red in ("mean", "sum", "none"):
        got = jax.block_until_ready(cross_entropy_loss_chexpert(yp2, yt2, red))
        want = _reference_bce(yp2, yt2, red)
        assert jnp.allclose(got, want, rtol=1e-5, atol=1e-3), (red, got, want)

    # 1-D path (reshaped to (-1, 1) like the PyTorch module); tiny -> pure-JAX tail.
    yp1 = jax.random.normal(k5, (40,), dtype=jnp.float32)
    yt1 = (jax.random.uniform(k6, (40,)) > 0.5).astype(jnp.float32)
    loss1 = jax.block_until_ready(cross_entropy_loss_chexpert(yp1, yt1))
    ref1 = _reference_bce(yp1, yt1)
    assert jnp.allclose(loss1, ref1, rtol=1e-5, atol=1e-5), (loss1, ref1)

    print("KERNEL_OK")
</pallas_src>

<mosaic_0001>
module attributes {stable_mosaic.version = 11 : i64} {
  func.func @_bce_reduce_kernel(%arg0: i32, %arg1: i32, %arg2: memref<8x128xf32, #tpu.memory_space<vmem>>, %arg3: memref<8x128xf32, #tpu.memory_space<vmem>>, %arg4: memref<1x8x128xf32, #tpu.memory_space<vmem>>) attributes {dimension_semantics = [#tpu.dimension_semantics<parallel>, #tpu.dimension_semantics<arbitrary>], iteration_bounds = array<i64: 1, 1>, scalar_prefetch = 0 : i64, scratch_operands = 0 : i64, tpu.core_type = #tpu.core_type<tc>, window_params = [{transform_indices = @transform_0, window_bounds = array<i64: 8, 128>}, {transform_indices = @transform_1, window_bounds = array<i64: 8, 128>}, {transform_indices = @transform_2, window_bounds = array<i64: 1, 8, 128>}]} {
    %c0_i32 = arith.constant 0 : i32
    %0 = arith.cmpi eq, %arg1, %c0_i32 : i32
    %1 = arith.extui %0 : i1 to i32
    %c0_i32_0 = arith.constant 0 : i32
    %2 = arith.cmpi ne, %1, %c0_i32_0 : i32
    scf.if %2 {
      %cst_12 = arith.constant 0.000000e+00 : f32
      %21 = vector.broadcast %cst_12 : f32 to vector<1x8x128xf32>
      %c0_13 = arith.constant 0 : index
      %c0_14 = arith.constant 0 : index
      %c0_15 = arith.constant 0 : index
      %22 = vector.load %arg4[%c0_13, %c0_14, %c0_15] : memref<1x8x128xf32, #tpu.memory_space<vmem>>, vector<1x8x128xf32>
      tpu.vector_store %arg4[%c0_13, %c0_14, %c0_15], %21 {strides = array<i32>} : memref<1x8x128xf32, #tpu.memory_space<vmem>>, vector<1x8x128xf32>,
    } else {
    }
    %c0 = arith.constant 0 : index
    %c0_1 = arith.constant 0 : index
    %3 = vector.load %arg2[%c0, %c0_1] : memref<8x128xf32, #tpu.memory_space<vmem>>, vector<8x128xf32>
    %c0_2 = arith.constant 0 : index
    %c0_3 = arith.constant 0 : index
    %4 = vector.load %arg3[%c0_2, %c0_3] : memref<8x128xf32, #tpu.memory_space<vmem>>, vector<8x128xf32>
    %cst = arith.constant 0.000000e+00 : f32
    %5 = vector.broadcast %cst : f32 to vector<8x128xf32>
    %6 = arith.maximumf %3, %5 : vector<8x128xf32>
    %7 = arith.mulf %3, %4 : vector<8x128xf32>
    %8 = arith.subf %6, %7 : vector<8x128xf32>
    %9 = math.absf %3 : vector<8x128xf32>
    %cst_4 = arith.constant 0.000000e+00 : f32
    %10 = vector.broadcast %cst_4 : f32 to vector<8x128xf32>
    %11 = arith.subf %10, %9 : vector<8x128xf32>
    %12 = math.exp %11 : vector<8x128xf32>
    %13 = math.log1p %12 : vector<8x128xf32>
    %14 = arith.addf %8, %13 : vector<8x128xf32>
    %15 = vector.shape_cast %14 : vector<8x128xf32> to vector<1x8x128xf32>
    %cst_5 = arith.constant dense<0.000000e+00> : vector<8x128xf32>
    %16 = vector.multi_reduction <add>, %15, %cst_5 [0] : vector<1x8x128xf32> to vector<8x128xf32>
    %c0_6 = arith.constant 0 : index
    %c0_7 = arith.constant 0 : index
    %c0_8 = arith.constant 0 : index
    %17 = vector.load %arg4[%c0_6, %c0_7, %c0_8] : memref<1x8x128xf32, #tpu.memory_space<vmem>>, vector<1x8x128xf32>
    %18 = vector.shape_cast %16 : vector<8x128xf32> to vector<1x8x128xf32>
    %19 = arith.addf %17, %18 : vector<1x8x128xf32>
    %c0_9 = arith.constant 0 : index
    %c0_10 = arith.constant 0 : index
    %c0_11 = arith.constant 0 : index
    %20 = vector.load %arg4[%c0_9, %c0_10, %c0_11] : memref<1x8x128xf32, #tpu.memory_space<vmem>>, vector<1x8x128xf32>
    tpu.vector_store %arg4[%c0_9, %c0_10, %c0_11], %19 {strides = array<i32>} : memref<1x8x128xf32, #tpu.memory_space<vmem>>, vector<1x8x128xf32>,
    return
  }
  func.func @transform_0(%arg0: i32, %arg1: i32) -> (i32, i32) {
    %c1_i32 = arith.constant 1 : i32
    %0 = arith.muli %arg0, %c1_i32 : i32
    %1 = arith.addi %0, %arg1 : i32
    %c0_i32 = arith.constant 0 : i32
    %c0_i32_0 = arith.constant 0 : i32
    return %1, %c0_i32 : i32, i32
  }
  func.func @transform_1(%arg0: i32, %arg1: i32) -> (i32, i32) {
    %c1_i32 = arith.constant 1 : i32
    %0 = arith.muli %arg0, %c1_i32 : i32
    %1 = arith.addi %0, %arg1 : i32
    %c0_i32 = arith.constant 0 : i32
    %c0_i32_0 = arith.constant 0 : i32
    return %1, %c0_i32 : i32, i32
  }
  func.func @transform_2(%arg0: i32, %arg1: i32) -> (i32, i32, i32) {
    %c0_i32 = arith.constant 0 : i32
    %c0_i32_0 = arith.constant 0 : i32
    %c0_i32_1 = arith.constant 0 : i32
    return %arg0, %c0_i32, %c0_i32_0 : i32, i32, i32
  }
}

</mosaic_0001>

<llo_original>
// kernel: tpu_custom_call.1
$region0: #{tpu_custom_call.1}
  #allocation0 [shape = 'u32[]', space=smem, size = 0x4, offset = 0x4, fixed_abs, tag = 'smem constant byte address 0x4 - core index']
  #allocation1 [shape = 'u32[144,128]{1,0:T(1,128)}', space=vmem, size = 0x12000, scoped, tag = 'internal scratch']
  %s0 = inlined_call_operand.hbm [shape: f32[8,128], index: 0, kind: input, shape index: {}]
  %s1 = inlined_call_operand.hbm [shape: f32[8,128], index: 1, kind: input, shape index: {}]
  %s2 = inlined_call_operand.hbm [shape: f32[1,8,128], index: 2, kind: output, shape index: {}]
  %s3 = sld [smem:[#allocation0]]
  $region30: #{tpu_custom_call.1} parent=0
    _
  %s5 = ssub.s32 1, %s3
  %s6 = scalar_select 0, %s5, %s3
  $region1: #{tpu_custom_call.1} parent=0
    #allocation2 [shape = 'u8[4096]{0}', space=vmem, size = 0x1000, scoped, tag = 'input window, operand 0, single buffered']
    #allocation3 [shape = 's32[1]{0}', space=sflag, size = 0x4, scoped, tag = 'scoped memory for tpu_custom_call.1']
    #allocation4 [shape = 's32[1]{0}', space=sflag, size = 0x4, scoped, tag = 'scoped memory for tpu_custom_call.1']
    #allocation5 [shape = 'u8[4096]{0}', space=vmem, size = 0x1000, scoped, tag = 'input window, operand 1, single buffered']
    #allocation6 [shape = 's32[1]{0}', space=sflag, size = 0x4, scoped, tag = 'scoped memory for tpu_custom_call.1']
    #allocation7 [shape = 'u8[4096]{0}', space=vmem, size = 0x1000, scoped, tag = 'output window, operand 0, single buffered']
    %7 = vsyncpa [#allocation3], 0
    %8 = vsyncpa [#allocation6], 0
    %9 = vsyncpa [#allocation4], 0
    // Predicated region
    $region2: #{tpu_custom_call.1} parent=1 // pred_check
      _
    $region3: #{tpu_custom_call.1} parent=1 // pred_check_branch
      %11 = sbr.rel (0) target = $region5
    $region4: #{tpu_custom_call.1} parent=1 // pred_region
      %s12 = sadd.s32 0, 0
      %s14 = ssub.s32 128, 128
      %15 = vsyncadd [#allocation3], %s14
      %s16 = smul.addr %s12, 128
      %s17 = scalar_lea.hbm %s0, %s16
      %s19 = sshll.u32 [#allocation2], 4
      %s20 = int_to_ptr.vmem [resolvable:$true] %s19
      %22 = dma.hbm_to_vmem [thread:$0]  %s17, 128, %s20, [#allocation3]
    $region5: #{tpu_custom_call.1} parent=1 // pred_fallthru
      _
    // Predicated region
    $region6: #{tpu_custom_call.1} parent=1 // pred_check
      _
    $region7: #{tpu_custom_call.1} parent=1 // pred_check_branch
      %24 = sbr.rel (0) target = $region9
    $region8: #{tpu_custom_call.1} parent=1 // pred_region
      %s25 = sadd.s32 0, 0
      %s27 = ssub.s32 128, 128
      %28 = vsyncadd [#allocation6], %s27
      %s29 = smul.addr %s25, 128
      %s30 = scalar_lea.hbm %s1, %s29
      %s32 = sshll.u32 [#allocation5], 4
      %s33 = int_to_ptr.vmem [resolvable:$true] %s32
      %35 = dma.hbm_to_vmem [thread:$0]  %s30, 128, %s33, [#allocation6]
    $region9: #{tpu_custom_call.1} parent=1 // pred_fallthru
      _
    // Predicated region
    $region10: #{tpu_custom_call.1} parent=1 // pred_check
      _
    $region11: #{tpu_custom_call.1} parent=1 // pred_check_branch
      %37 = sbr.rel (0) target = $region13
    $region12: #{tpu_custom_call.1} parent=1 // pred_region
      %38 = dma.done [#allocation3], 128
    $region13: #{tpu_custom_call.1} parent=1 // pred_fallthru
      _
    // Predicated region
    $region14: #{tpu_custom_call.1} parent=1 // pred_check
      _
    $region15: #{tpu_custom_call.1} parent=1 // pred_check_branch
      %40 = sbr.rel (0) target = $region17
    $region16: #{tpu_custom_call.1} parent=1 // pred_region
      %41 = dma.done [#allocation6], 128
    $region17: #{tpu_custom_call.1} parent=1 // pred_fallthru
      _
    %s42 = sadd.s32 0, 0
    %s43 = sadd.s32 0, 0
    %p44 = scmp.eq.s32.totalorder 0, 0
    // Predicated region
    $region18: #{tpu_custom_call.1} parent=1 // pred_check
      %p45 = pneg %p44
    $region19: #{tpu_custom_call.1} parent=1 // pred_check_branch
      %47 = sbr.rel (%p45) target = $region21
    $region20: #{tpu_custom_call.1} parent=1 // pred_region
      %48 = vst [vmem:[#allocation7] sm:$0xff] 0.0
    $region21: #{tpu_custom_call.1} parent=1 // pred_fallthru
      _
    %v49 = vld [vmem:[#allocation2] sm:$0xff]
    %v50 = vld [vmem:[#allocation5] sm:$0xff]
    %v51 = vmax.f32 %v49, 0.0
    %v52 = vmul.f32 %v49, %v50
    %v53 = vsub.f32 %v51, %v52
    %v54 = vand.u32 2147483647, %v49
    %v55 = vsub.f32 0.0, %v54
    %v56 = vmul.f32 %v55, 1.442695
    %v57 = vpow.pop %v56
    %v58 = vadd.f32 %v57, 1.0
    %v59 = vlog2.pop %v58
    %v60 = vmul.f32 %v59, 0.6931472
    %v61 = vmul.f32 -0.5, %v57
    %v62 = vadd.f32 %v61, 1.0
    %v63 = vmul.f32 %v62, %v57
    %v64 = vand.u32 2147483647, %v57
    %vm65 = vcmp.lt.f32.partialorder %v64, 0.0004427343
    %v66 = vsel %vm65, %v63, %v60
    %v67 = vadd.f32 %v53, %v66
    %v68 = vadd.f32 %v67, 0.0
    %v69 = vld [vmem:[#allocation7] sm:$0xff]
    %v70 = vadd.f32 %v69, %v68
    %71 = vst [vmem:[#allocation7] sm:$0xff] %v70
    // Predicated region
    $region22: #{tpu_custom_call.1} parent=1 // pred_check
      _
    $region23: #{tpu_custom_call.1} parent=1 // pred_check_branch
      %73 = sbr.rel (0) target = $region25
    $region24: #{tpu_custom_call.1} parent=1 // pred_region
      %s75 = ssub.s32 128, 128
      %76 = vsyncadd [#allocation4], %s75
      %s78 = sshll.u32 [#allocation7], 4
      %s79 = int_to_ptr.vmem [resolvable:$true] %s78
      %81 = dma.vmem_to_hbm [thread:$0]  %s79, 128, %s2, [#allocation4]
    $region25: #{tpu_custom_call.1} parent=1 // pred_fallthru
      _
    // Predicated region
    $region26: #{tpu_custom_call.1} parent=1 // pred_check
      _
    $region27: #{tpu_custom_call.1} parent=1 // pred_check_branch
      %83 = sbr.rel (0) target = $region29
    $region28: #{tpu_custom_call.1} parent=1 // pred_region
      %84 = dma.done [#allocation4], 128
    $region29: #{tpu_custom_call.1} parent=1 // pred_fallthru
      _
    %85 = vsyncpa [#allocation3], 1
    %86 = vsyncpa [#allocation6], 1
    %87 = vsyncpa [#allocation4], 1

</llo_original>
